<compile_context>
chip_gen: v5e
topology: v5e:2x2
jax: 0.10.0
libtpu: 0.0.40
codegen_flags: <defaults>
</compile_context>

<pallas_src>
import math

import jax
import jax.numpy as jnp
from jax import lax
from jax.experimental import pallas as pl
from jax.experimental.pallas import tpu as pltpu

# ----- model dims (small, consistent with the module) -----
SEQ = 32          # must equal HIDDEN (see broadcast note above)
INPUT_DIM = 16
HIDDEN = 32
OUTPUT_DIM = 8
NUM_HEADS = 4     # unused by the reference forward (single projection), kept for parity
NUM_LAYERS = 1    # unused by the reference forward

assert SEQ == HIDDEN, "reference's `weights * value` broadcast requires seq_len == hidden_dim"

# ----- packed-parameter slab layout (all chunks 128-lane aligned) -----
LANE = 128
OFF_QKV_E = 0 * LANE   # cols [  0,  96): encoder fused q|k|v weights, rows 0:INPUT_DIM
OFF_FF_E  = 1 * LANE   # cols [128, 160): encoder feed_forward (H, H)
OFF_QKV_D = 2 * LANE   # cols [256, 352): decoder fused q|k|v weights, rows 0:HIDDEN
OFF_FF_D  = 3 * LANE   # cols [384, 512): decoder feed_forward (H, OUTPUT_DIM) zero-padded to 128
SLAB_LANES = 4 * LANE  # 512 lanes; weight slab is (HIDDEN, 512) = 64 KiB f32


def _attention(x, wqkv, bqkv):
    """MultiHeadAttention.forward with q = k = v = x.

    1/sqrt(HIDDEN) is pre-folded into the q columns of (wqkv, bqkv)."""
    qkv = jnp.dot(x, wqkv, preferred_element_type=jnp.float32) + bqkv     # (S, 3H)
    q = qkv[:, 0:HIDDEN]
    k = qkv[:, HIDDEN:2 * HIDDEN]
    v = qkv[:, 2 * HIDDEN:3 * HIDDEN]
    # q @ k.T without materializing the transpose.
    scores = lax.dot_general(q, k, (((1,), (1,)), ((), ())),
                             preferred_element_type=jnp.float32)          # (S, S)
    # dropout(0.1) -> identity (eval semantics)
    m = jnp.max(scores, axis=-1, keepdims=True)
    p = jnp.exp(scores - m)
    inv = pl.reciprocal(jnp.sum(p, axis=-1, keepdims=True), approx=True)
    weights = p * inv                                                     # softmax(dim=-1)
    return weights * v                                                    # elementwise (S==H)


def transformer_kernel(x_ref, w_ref, b_ref, out_ref):
    x = x_ref[...]                                                        # (SEQ, INPUT_DIM)

    # ---- encoder layer: self-attn + feed_forward(Linear H->H) ----
    attn_e = _attention(
        x,
        w_ref[0:INPUT_DIM, OFF_QKV_E:OFF_QKV_E + 3 * HIDDEN],
        b_ref[:, OFF_QKV_E:OFF_QKV_E + 3 * HIDDEN])
    enc = (jnp.dot(attn_e, w_ref[:, OFF_FF_E:OFF_FF_E + HIDDEN],
                   preferred_element_type=jnp.float32)
           + b_ref[:, OFF_FF_E:OFF_FF_E + HIDDEN])                        # (SEQ, HIDDEN)

    # ---- decoder layer: self-attn + feed_forward(Linear H->OUT) ----
    # (decoder.encoder_attn exists in __init__ but is never used in forward)
    attn_d = _attention(
        enc,
        w_ref[:, OFF_QKV_D:OFF_QKV_D + 3 * HIDDEN],
        b_ref[:, OFF_QKV_D:OFF_QKV_D + 3 * HIDDEN])
    # lane-dense (SEQ, 128) output; columns >= OUTPUT_DIM are zero by construction
    out = (jnp.dot(attn_d, w_ref[:, OFF_FF_D:OFF_FF_D + LANE],
                   preferred_element_type=jnp.float32)
           + b_ref[:, OFF_FF_D:OFF_FF_D + LANE])
    out_ref[...] = out.astype(out_ref.dtype)


@jax.jit
def transformer_forward(x, w_slab, b_slab):
    out_pad = pl.pallas_call(
        transformer_kernel,
        out_shape=jax.ShapeDtypeStruct((SEQ, LANE), jnp.float32),
        in_specs=[pl.BlockSpec(memory_space=pltpu.MemorySpace.VMEM)] * 3,
        out_specs=pl.BlockSpec(memory_space=pltpu.MemorySpace.VMEM),
    )(x, w_slab, b_slab)
    return out_pad[:, :OUTPUT_DIM]


def init_params(key):
    """Deterministic synthetic parameters (unpacked, nn.Linear-equivalent).

    nn.Linear(in, out) stores weight (out, in) and computes x @ W.T + b.
    We store the pre-transposed (in, out) weight so matmuls are natural.
    Biases stored as (1, out)."""
    def linear(k, din, dout):
        kw, kb = jax.random.split(k)
        w = jax.random.normal(kw, (din, dout), jnp.float32) * 0.05
        b = jax.random.normal(kb, (1, dout), jnp.float32) * 0.05
        return w, b

    keys = jax.random.split(key, 8)
    wq_e, bq_e = linear(keys[0], INPUT_DIM, HIDDEN)
    wk_e, bk_e = linear(keys[1], INPUT_DIM, HIDDEN)
    wv_e, bv_e = linear(keys[2], INPUT_DIM, HIDDEN)
    wf_e, bf_e = linear(keys[3], HIDDEN, HIDDEN)
    wq_d, bq_d = linear(keys[4], HIDDEN, HIDDEN)
    wk_d, bk_d = linear(keys[5], HIDDEN, HIDDEN)
    wv_d, bv_d = linear(keys[6], HIDDEN, HIDDEN)
    wf_d, bf_d = linear(keys[7], HIDDEN, OUTPUT_DIM)
    return (wq_e, bq_e, wk_e, bk_e, wv_e, bv_e, wf_e, bf_e,
            wq_d, bq_d, wk_d, bk_d, wv_d, bv_d, wf_d, bf_d)


def pack_params(params):
    """One-time packing: all weights -> one (HIDDEN, 512) slab, all biases ->
    one (1, 512) slab, each block aligned to a 128-lane boundary.  The softmax
    scale 1/sqrt(HIDDEN) is folded into the Q projection weight and bias."""
    (wq_e, bq_e, wk_e, bk_e, wv_e, bv_e, wf_e, bf_e,
     wq_d, bq_d, wk_d, bk_d, wv_d, bv_d, wf_d, bf_d) = params
    s = 1.0 / math.sqrt(HIDDEN)

    w_slab = jnp.zeros((HIDDEN, SLAB_LANES), jnp.float32)
    b_slab = jnp.zeros((1, SLAB_LANES), jnp.float32)

    wqkv_e = jnp.concatenate([wq_e * s, wk_e, wv_e], axis=1)      # (INPUT_DIM, 96)
    bqkv_e = jnp.concatenate([bq_e * s, bk_e, bv_e], axis=1)      # (1, 96)
    wqkv_d = jnp.concatenate([wq_d * s, wk_d, wv_d], axis=1)      # (HIDDEN, 96)
    bqkv_d = jnp.concatenate([bq_d * s, bk_d, bv_d], axis=1)      # (1, 96)

    w_slab = w_slab.at[:INPUT_DIM, OFF_QKV_E:OFF_QKV_E + 3 * HIDDEN].set(wqkv_e)
    w_slab = w_slab.at[:, OFF_FF_E:OFF_FF_E + HIDDEN].set(wf_e)
    w_slab = w_slab.at[:, OFF_QKV_D:OFF_QKV_D + 3 * HIDDEN].set(wqkv_d)
    w_slab = w_slab.at[:, OFF_FF_D:OFF_FF_D + OUTPUT_DIM].set(wf_d)

    b_slab = b_slab.at[:, OFF_QKV_E:OFF_QKV_E + 3 * HIDDEN].set(bqkv_e)
    b_slab = b_slab.at[:, OFF_FF_E:OFF_FF_E + HIDDEN].set(bf_e)
    b_slab = b_slab.at[:, OFF_QKV_D:OFF_QKV_D + 3 * HIDDEN].set(bqkv_d)
    b_slab = b_slab.at[:, OFF_FF_D:OFF_FF_D + OUTPUT_DIM].set(bf_d)
    return w_slab, b_slab


def reference_forward(x, params):
    """Pure-JAX reference of the same (buggy-module) semantics."""
    (wq_e, bq_e, wk_e, bk_e, wv_e, bv_e, wf_e, bf_e,
     wq_d, bq_d, wk_d, bk_d, wv_d, bv_d, wf_d, bf_d) = params
    inv = 1.0 / math.sqrt(HIDDEN)

    def attn(x, wq, bq, wk, bk, wv, bv):
        q, k, v = x @ wq + bq, x @ wk + bk, x @ wv + bv
        s = (q @ k.T) * inv
        w = jax.nn.softmax(s, axis=-1)
        return w * v

    enc = attn(x, wq_e, bq_e, wk_e, bk_e, wv_e, bv_e) @ wf_e + bf_e
    return attn(enc, wq_d, bq_d, wk_d, bk_d, wv_d, bv_d) @ wf_d + bf_d


if __name__ == "__main__":
    key = jax.random.PRNGKey(0)
    k_x, k_p = jax.random.split(key)
    x = jax.random.normal(k_x, (SEQ, INPUT_DIM), jnp.float32)   # input_seq
    params = init_params(k_p)
    w_slab, b_slab = pack_params(params)                        # one-time packing

    out = transformer_forward(x, w_slab, b_slab)
    out = jax.block_until_ready(out)

    ref = reference_forward(x, params)
    assert out.shape == (SEQ, OUTPUT_DIM)
    # approx reciprocal in the softmax denominator -> slightly looser tolerance
    assert jnp.allclose(out, ref, atol=1e-3, rtol=1e-3), "mismatch vs pure-JAX reference"

    print("KERNEL_OK")
</pallas_src>

<mosaic_0001>
module attributes {stable_mosaic.version = 11 : i64} {
  func.func @transformer_kernel(%arg0: memref<32x16xf32, #tpu.memory_space<vmem>>, %arg1: memref<32x512xf32, #tpu.memory_space<vmem>>, %arg2: memref<1x512xf32, #tpu.memory_space<vmem>>, %arg3: memref<32x128xf32, #tpu.memory_space<vmem>>) attributes {dimension_semantics = [], scalar_prefetch = 0 : i64, scratch_operands = 0 : i64, tpu.core_type = #tpu.core_type<tc>} {
    %c0 = arith.constant 0 : index
    %c0_0 = arith.constant 0 : index
    %0 = vector.load %arg0[%c0, %c0_0] : memref<32x16xf32, #tpu.memory_space<vmem>>, vector<32x16xf32>
    %c0_1 = arith.constant 0 : index
    %c0_2 = arith.constant 0 : index
    %1 = vector.load %arg1[%c0_1, %c0_2] : memref<32x512xf32, #tpu.memory_space<vmem>>, vector<16x96xf32>
    %c0_3 = arith.constant 0 : index
    %c0_4 = arith.constant 0 : index
    %2 = vector.load %arg2[%c0_3, %c0_4] : memref<1x512xf32, #tpu.memory_space<vmem>>, vector<1x96xf32>
    %cst = arith.constant dense<0.000000e+00> : vector<32x96xf32>
    %3 = tpu.matmul %0, %1, %cst {dimension_numbers = #tpu.dot_dimension_numbers<[1], [0], [0], [1], [0, 0, 1, 1], [], []>} : vector<32x16xf32>, vector<16x96xf32>, vector<32x96xf32> -> vector<32x96xf32>
    %4 = vector.broadcast %2 : vector<1x96xf32> to vector<32x96xf32>
    %5 = arith.addf %3, %4 : vector<32x96xf32>
    %6 = vector.extract_strided_slice %5 {offsets = [0, 0], sizes = [32, 32], strides = [1, 1]} : vector<32x96xf32> to vector<32x32xf32>
    %7 = vector.extract_strided_slice %5 {offsets = [0, 32], sizes = [32, 32], strides = [1, 1]} : vector<32x96xf32> to vector<32x32xf32>
    %8 = vector.extract_strided_slice %5 {offsets = [0, 64], sizes = [32, 32], strides = [1, 1]} : vector<32x96xf32> to vector<32x32xf32>
    %cst_5 = arith.constant dense<0.000000e+00> : vector<32x32xf32>
    %9 = tpu.matmul %6, %7, %cst_5 {dimension_numbers = #tpu.dot_dimension_numbers<[1], [1], [0], [0], [0, 0, 1, 0], [], []>} : vector<32x32xf32>, vector<32x32xf32>, vector<32x32xf32> -> vector<32x32xf32>
    %cst_6 = arith.constant dense<0xFF800000> : vector<32xf32>
    %10 = vector.multi_reduction <maximumf>, %9, %cst_6 [1] : vector<32x32xf32> to vector<32xf32>
    %11 = vector.shape_cast %10 : vector<32xf32> to vector<32x1xf32>
    %12 = vector.broadcast %11 : vector<32x1xf32> to vector<32x32xf32>
    %13 = arith.subf %9, %12 : vector<32x32xf32>
    %14 = math.exp %13 : vector<32x32xf32>
    %cst_7 = arith.constant dense<0.000000e+00> : vector<32xf32>
    %15 = vector.multi_reduction <add>, %14, %cst_7 [1] : vector<32x32xf32> to vector<32xf32>
    %16 = vector.shape_cast %15 : vector<32xf32> to vector<32x1xf32>
    %17 = tpu.reciprocal %16 {approx = true} : vector<32x1xf32> -> vector<32x1xf32>
    %18 = vector.broadcast %17 : vector<32x1xf32> to vector<32x32xf32>
    %19 = arith.mulf %14, %18 : vector<32x32xf32>
    %20 = arith.mulf %19, %8 : vector<32x32xf32>
    %c0_8 = arith.constant 0 : index
    %c128 = arith.constant 128 : index
    %21 = vector.load %arg1[%c0_8, %c128] : memref<32x512xf32, #tpu.memory_space<vmem>>, vector<32x32xf32>
    %cst_9 = arith.constant dense<0.000000e+00> : vector<32x32xf32>
    %22 = tpu.matmul %20, %21, %cst_9 {dimension_numbers = #tpu.dot_dimension_numbers<[1], [0], [0], [1], [0, 0, 1, 1], [], []>} : vector<32x32xf32>, vector<32x32xf32>, vector<32x32xf32> -> vector<32x32xf32>
    %c0_10 = arith.constant 0 : index
    %c128_11 = arith.constant 128 : index
    %23 = vector.load %arg2[%c0_10, %c128_11] : memref<1x512xf32, #tpu.memory_space<vmem>>, vector<1x32xf32>
    %24 = vector.broadcast %23 : vector<1x32xf32> to vector<32x32xf32>
    %25 = arith.addf %22, %24 : vector<32x32xf32>
    %c0_12 = arith.constant 0 : index
    %c256 = arith.constant 256 : index
    %26 = vector.load %arg1[%c0_12, %c256] : memref<32x512xf32, #tpu.memory_space<vmem>>, vector<32x96xf32>
    %c0_13 = arith.constant 0 : index
    %c256_14 = arith.constant 256 : index
    %27 = vector.load %arg2[%c0_13, %c256_14] : memref<1x512xf32, #tpu.memory_space<vmem>>, vector<1x96xf32>
    %cst_15 = arith.constant dense<0.000000e+00> : vector<32x96xf32>
    %28 = tpu.matmul %25, %26, %cst_15 {dimension_numbers = #tpu.dot_dimension_numbers<[1], [0], [0], [1], [0, 0, 1, 1], [], []>} : vector<32x32xf32>, vector<32x96xf32>, vector<32x96xf32> -> vector<32x96xf32>
    %29 = vector.broadcast %27 : vector<1x96xf32> to vector<32x96xf32>
    %30 = arith.addf %28, %29 : vector<32x96xf32>
    %31 = vector.extract_strided_slice %30 {offsets = [0, 0], sizes = [32, 32], strides = [1, 1]} : vector<32x96xf32> to vector<32x32xf32>
    %32 = vector.extract_strided_slice %30 {offsets = [0, 32], sizes = [32, 32], strides = [1, 1]} : vector<32x96xf32> to vector<32x32xf32>
    %33 = vector.extract_strided_slice %30 {offsets = [0, 64], sizes = [32, 32], strides = [1, 1]} : vector<32x96xf32> to vector<32x32xf32>
    %cst_16 = arith.constant dense<0.000000e+00> : vector<32x32xf32>
    %34 = tpu.matmul %31, %32, %cst_16 {dimension_numbers = #tpu.dot_dimension_numbers<[1], [1], [0], [0], [0, 0, 1, 0], [], []>} : vector<32x32xf32>, vector<32x32xf32>, vector<32x32xf32> -> vector<32x32xf32>
    %cst_17 = arith.constant dense<0xFF800000> : vector<32xf32>
    %35 = vector.multi_reduction <maximumf>, %34, %cst_17 [1] : vector<32x32xf32> to vector<32xf32>
    %36 = vector.shape_cast %35 : vector<32xf32> to vector<32x1xf32>
    %37 = vector.broadcast %36 : vector<32x1xf32> to vector<32x32xf32>
    %38 = arith.subf %34, %37 : vector<32x32xf32>
    %39 = math.exp %38 : vector<32x32xf32>
    %cst_18 = arith.constant dense<0.000000e+00> : vector<32xf32>
    %40 = vector.multi_reduction <add>, %39, %cst_18 [1] : vector<32x32xf32> to vector<32xf32>
    %41 = vector.shape_cast %40 : vector<32xf32> to vector<32x1xf32>
    %42 = tpu.reciprocal %41 {approx = true} : vector<32x1xf32> -> vector<32x1xf32>
    %43 = vector.broadcast %42 : vector<32x1xf32> to vector<32x32xf32>
    %44 = arith.mulf %39, %43 : vector<32x32xf32>
    %45 = arith.mulf %44, %33 : vector<32x32xf32>
    %c0_19 = arith.constant 0 : index
    %c384 = arith.constant 384 : index
    %46 = vector.load %arg1[%c0_19, %c384] : memref<32x512xf32, #tpu.memory_space<vmem>>, vector<32x128xf32>
    %cst_20 = arith.constant dense<0.000000e+00> : vector<32x128xf32>
    %47 = tpu.matmul %45, %46, %cst_20 {dimension_numbers = #tpu.dot_dimension_numbers<[1], [0], [0], [1], [0, 0, 1, 1], [], []>} : vector<32x32xf32>, vector<32x128xf32>, vector<32x128xf32> -> vector<32x128xf32>
    %c0_21 = arith.constant 0 : index
    %c384_22 = arith.constant 384 : index
    %48 = vector.load %arg2[%c0_21, %c384_22] : memref<1x512xf32, #tpu.memory_space<vmem>>, vector<1x128xf32>
    %49 = vector.broadcast %48 : vector<1x128xf32> to vector<32x128xf32>
    %50 = arith.addf %47, %49 : vector<32x128xf32>
    %c0_23 = arith.constant 0 : index
    %c0_24 = arith.constant 0 : index
    %51 = vector.load %arg3[%c0_23, %c0_24] : memref<32x128xf32, #tpu.memory_space<vmem>>, vector<32x128xf32>
    tpu.vector_store %arg3[%c0_23, %c0_24], %50 {strides = array<i32>} : memref<32x128xf32, #tpu.memory_space<vmem>>, vector<32x128xf32>,
    return
  }
}

</mosaic_0001>

<llo_original>
// kernel: transformer_forward.1
$region0: #{transformer_forward.1}
  #allocation0 [shape = 'u32[]', space=smem, size = 0x4, offset = 0x4, fixed_abs, tag = 'smem constant byte address 0x4 - core index']
  #allocation1 [shape = 'u32[72,128]{1,0:T(1,128)}', space=vmem, size = 0x9000, scoped, tag = 'internal scratch']
  %s0 = inlined_call_operand.vmem [shape: f32[32,16], index: 0, kind: input, shape index: {}]
  %s1 = inlined_call_operand.hbm [shape: f32[32,512], index: 1, kind: input, shape index: {}]
  %s2 = inlined_call_operand.vmem [shape: f32[1,512], index: 2, kind: input, shape index: {}]
  %s3 = inlined_call_operand.vmem [shape: f32[32,128], index: 3, kind: output, shape index: {}]
  %s4 = sld [smem:[#allocation0]]
  $region26: #{transformer_forward.1} parent=0
    _
  %s6 = ssub.s32 1, %s4
  %s7 = scalar_select 0, %s6, %s4
  $region1: #{transformer_forward.1} parent=0
    #allocation2 [shape = 'u8[65536]{0}', space=vmem, size = 0x10000, scoped, tag = 'input window, operand 1, single buffered']
    #allocation3 [shape = 's32[1]{0}', space=sflag, size = 0x4, scoped, tag = 'scoped memory for transformer_forward.1']
    %8 = vsyncpa [#allocation3], 0
    // Predicated region
    $region2: #{transformer_forward.1} parent=1 // pred_check
      _
    $region3: #{transformer_forward.1} parent=1 // pred_check_branch
      %10 = sbr.rel (0) target = $region5
    $region4: #{transformer_forward.1} parent=1 // pred_region
      _
    $region5: #{transformer_forward.1} parent=1 // pred_fallthru
      _
    // Predicated region
    $region6: #{transformer_forward.1} parent=1 // pred_check
      _
    $region7: #{transformer_forward.1} parent=1 // pred_check_branch
      %12 = sbr.rel (0) target = $region9
    $region8: #{transformer_forward.1} parent=1 // pred_region
      %14 = vsyncadd [#allocation3], 0
      %s15 = sshll.u32 %s1, 4
      %s16 = int_to_ptr.hbm [resolvable:$true] %s15
      %s17 = sshll.u32 [#allocation2], 4
      %s18 = int_to_ptr.vmem [resolvable:$true] %s17
      %23 = dma.hbm_to_vmem [thread:$0]  %s16, 2048, %s18, [#allocation3], 512, 512, 32
    $region9: #{transformer_forward.1} parent=1 // pred_fallthru
      _
    // Predicated region
    $region10: #{transformer_forward.1} parent=1 // pred_check
      _
    $region11: #{transformer_forward.1} parent=1 // pred_check_branch
      %25 = sbr.rel (0) target = $region13
    $region12: #{transformer_forward.1} parent=1 // pred_region
      _
    $region13: #{transformer_forward.1} parent=1 // pred_fallthru
      _
    // Predicated region
    $region14: #{transformer_forward.1} parent=1 // pred_check
      _
    $region15: #{transformer_forward.1} parent=1 // pred_check_branch
      %27 = sbr.rel (0) target = $region17
    $region16: #{transformer_forward.1} parent=1 // pred_region
      %29 = dma.done [#allocation3], 2048
    $region17: #{transformer_forward.1} parent=1 // pred_fallthru
      _
    %v30 = vld [vmem:[%s0] sm:$0xff]
    %v31 = vld [vmem:[%s0 + $0x8] sm:$0xff]
    %v32 = vld [vmem:[%s0 + $0x10] sm:$0xff]
    %v33 = vld [vmem:[%s0 + $0x18] sm:$0xff]
    %v34 = vld [vmem:[#allocation2] sm:$0xff]
    %v35 = vld [vmem:[#allocation2 + $0x20] sm:$0xff]
    %v36 = vld [vmem:[%s2] sm:$0x1]
    %v38 = vperm.slane %v36, 0
    %vm40 = vcmask 130048
    %v42 = vsel %vm40, %v30, 0
    %v45 = vsel %vm40, %v31, 0
    %v48 = vsel %vm40, %v32, 0
    %v51 = vsel %vm40, %v33, 0
    %53 = vmatpush.msra.mxu0 0.0
    %54 = vmatpush.msra.mxu0 0.0
    %55 = vmatpush.msra.mxu0 0.0
    %56 = vmatpush.msra.mxu0 0.0
    %57 = vmatpush.msra.mxu0 0.0
    %58 = vmatpush.msra.mxu0 0.0
    %59 = vmatpush.msra.mxu0 0.0
    %60 = vmatpush.msra.mxu0 0.0
    %61 = vmatpush.msra.mxu0 0.0
    %62 = vmatpush.msra.mxu0 0.0
    %63 = vmatpush.msra.mxu0 0.0
    %64 = vmatpush.msra.mxu0 0.0
    %65 = vmatpush.msra.mxu0 0.0
    %66 = vmatpush.msra.mxu0 0.0
    %67 = vmatpush.msra.mxu0 %v35
    %68 = vmatpush.msra.mxu0 %v34
    %69 = vmatmul.f32.gmra.mxu0 %v42
    %v70 = vpop.f32.mrf.mxu0
    %v71 = vadd.f32 %v38, %v70
    %72 = vmatmul.f32.gmra.mxu0 %v45
    %v73 = vpop.f32.mrf.mxu0
    %v74 = vadd.f32 %v38, %v73
    %75 = vmatmul.f32.gmra.mxu0 %v48
    %v76 = vpop.f32.mrf.mxu0
    %v77 = vadd.f32 %v38, %v76
    %78 = vmatmul.f32.gmra.mxu0 %v51
    %v79 = vpop.f32.mrf.mxu0
    %v80 = vadd.f32 %v38, %v79
    %81 = vdwg.mxu0
    %86 = vrot.lane.b32.xlu0 %v71, 96
    %v87 = vpop.permute.xlu0 %86
    %88 = vrot.lane.b32.xlu0 %v74, 96
    %v89 = vpop.permute.xlu0 %88
    %90 = vrot.lane.b32.xlu0 %v77, 96
    %v91 = vpop.permute.xlu0 %90
    %92 = vrot.lane.b32.xlu0 %v80, 96
    %v93 = vpop.permute.xlu0 %92
    %vm94 = vcmask 261120
    %v95 = vsel %vm94, %v71, 0
    %v97 = vsel %vm94, %v74, 0
    %v99 = vsel %vm94, %v77, 0
    %v101 = vsel %vm94, %v80, 0
    %v103 = vsel %vm94, %v87, 0
    %v105 = vsel %vm94, %v89, 0
    %v107 = vsel %vm94, %v91, 0
    %v109 = vsel %vm94, %v93, 0
    %111 = vmatpush.xpose.msra.mxu0 0.0
    %112 = vmatpush.xpose.msra.mxu0 0.0
    %113 = vmatpush.xpose.msra.mxu0 0.0
    %114 = vmatpush.xpose.msra.mxu0 0.0
    %115 = vmatpush.xpose.msra.mxu0 0.0
    %116 = vmatpush.xpose.msra.mxu0 0.0
    %117 = vmatpush.xpose.msra.mxu0 0.0
    %118 = vmatpush.xpose.msra.mxu0 0.0
    %119 = vmatpush.xpose.msra.mxu0 0.0
    %120 = vmatpush.xpose.msra.mxu0 0.0
    %121 = vmatpush.xpose.msra.mxu0 0.0
    %122 = vmatpush.xpose.msra.mxu0 0.0
    %123 = vmatpush.xpose.msra.mxu0 %v109
    %124 = vmatpush.xpose.msra.mxu0 %v107
    %125 = vmatpush.xpose.msra.mxu0 %v105
    %126 = vmatpush.xpose.msra.mxu0 %v103
    %127 = vmatmul.f32.gmra.mxu0 %v95
    %v128 = vpop.f32.mrf.mxu0
    %v129 = vadd.f32 0.0, %v128
    %130 = vmatmul.f32.gmra.mxu0 %v97
    %v131 = vpop.f32.mrf.mxu0
    %v132 = vadd.f32 0.0, %v131
    %133 = vmatmul.f32.gmra.mxu0 %v99
    %v134 = vpop.f32.mrf.mxu0
    %v135 = vadd.f32 0.0, %v134
    %136 = vmatmul.f32.gmra.mxu0 %v101
    %v137 = vpop.f32.mrf.mxu0
    %v138 = vadd.f32 0.0, %v137
    %139 = vdwg.mxu0
    %v140 = vsel %vm94, %v129, -inf
    %141 = vmax.xlane.f32.xlu0 %v140
    %v142 = vpop.xlane.xlu0 %141
    %v143 = vsel %vm94, %v132, -inf
    %144 = vmax.xlane.f32.xlu0 %v143
    %v145 = vpop.xlane.xlu0 %144
    %v146 = vsel %vm94, %v135, -inf
    %147 = vmax.xlane.f32.xlu0 %v146
    %v148 = vpop.xlane.xlu0 %147
    %v149 = vsel %vm94, %v138, -inf
    %150 = vmax.xlane.f32.xlu0 %v149
    %v151 = vpop.xlane.xlu0 %150
    %v152 = vsub.f32 %v129, %v142
    %v153 = vsub.f32 %v132, %v145
    %v154 = vsub.f32 %v135, %v148
    %v155 = vsub.f32 %v138, %v151
    %v156 = vmul.f32 %v152, 1.442695
    %v157 = vpow.pop %v156
    %v158 = vmul.f32 %v153, 1.442695
    %v159 = vpow.pop %v158
    %v160 = vmul.f32 %v154, 1.442695
    %v161 = vpow.pop %v160
    %v162 = vmul.f32 %v155, 1.442695
    %v163 = vpow.pop %v162
    %v164 = vsel %vm94, %v157, 0.0
    %165 = vadd.xlane.f32.xlu0 %v164
    %v166 = vpop.xlane.xlu0 %165
    %v167 = vsel %vm94, %v159, 0.0
    %168 = vadd.xlane.f32.xlu0 %v167
    %v169 = vpop.xlane.xlu0 %168
    %v170 = vsel %vm94, %v161, 0.0
    %171 = vadd.xlane.f32.xlu0 %v170
    %v172 = vpop.xlane.xlu0 %171
    %v173 = vsel %vm94, %v163, 0.0
    %174 = vadd.xlane.f32.xlu0 %v173
    %v175 = vpop.xlane.xlu0 %174
    %v176 = vrcp.pop %v166
    %v177 = vrcp.pop %v169
    %v178 = vrcp.pop %v172
    %v179 = vrcp.pop %v175
    %v180 = vmul.f32 %v157, %v176
    %v181 = vmul.f32 %v159, %v177
    %v182 = vmul.f32 %v161, %v178
    %v183 = vmul.f32 %v163, %v179
    %184 = vrot.lane.b32.xlu0 %v71, 64
    %v185 = vpop.permute.xlu0 %184
    %186 = vrot.lane.b32.xlu0 %v74, 64
    %v187 = vpop.permute.xlu0 %186
    %188 = vrot.lane.b32.xlu0 %v77, 64
    %v189 = vpop.permute.xlu0 %188
    %190 = vrot.lane.b32.xlu0 %v80, 64
    %v191 = vpop.permute.xlu0 %190
    %v196 = vmul.f32 %v180, %v185
    %v197 = vmul.f32 %v181, %v187
    %v198 = vmul.f32 %v182, %v189
    %v199 = vmul.f32 %v183, %v191
    %v200 = vld [vmem:[#allocation2 + $0x8] sm:$0xff]
    %v201 = vld [vmem:[#allocation2 + $0x28] sm:$0xff]
    %v202 = vld [vmem:[#allocation2 + $0x48] sm:$0xff]
    %v203 = vld [vmem:[#allocation2 + $0x68] sm:$0xff]
    %v204 = vld [vmem:[%s2 + $0x1] sm:$0x1]
    %v206 = vperm.slane %v204, 0
    %v209 = vsel %vm94, %v196, 0
    %v212 = vsel %vm94, %v197, 0
    %v215 = vsel %vm94, %v198, 0
    %v218 = vsel %vm94, %v199, 0
    %220 = vmatpush.msra.mxu0 0.0
    %221 = vmatpush.msra.mxu0 0.0
    %222 = vmatpush.msra.mxu0 0.0
    %223 = vmatpush.msra.mxu0 0.0
    %224 = vmatpush.msra.mxu0 0.0
    %225 = vmatpush.msra.mxu0 0.0
    %226 = vmatpush.msra.mxu0 0.0
    %227 = vmatpush.msra.mxu0 0.0
    %228 = vmatpush.msra.mxu0 0.0
    %229 = vmatpush.msra.mxu0 0.0
    %230 = vmatpush.msra.mxu0 0.0
    %231 = vmatpush.msra.mxu0 0.0
    %232 = vmatpush.msra.mxu0 %v203
    %233 = vmatpush.msra.mxu0 %v202
    %234 = vmatpush.msra.mxu0 %v201
    %235 = vmatpush.msra.mxu0 %v200
    %236 = vmatmul.f32.gmra.mxu0 %v209
    %v237 = vpop.f32.mrf.mxu0
    %v238 = vadd.f32 %v206, %v237
    %239 = vmatmul.f32.gmra.mxu0 %v212
    %v240 = vpop.f32.mrf.mxu0
    %v241 = vadd.f32 %v206, %v240
    %242 = vmatmul.f32.gmra.mxu0 %v215
    %v243 = vpop.f32.mrf.mxu0
    %v244 = vadd.f32 %v206, %v243
    %245 = vmatmul.f32.gmra.mxu0 %v218
    %v246 = vpop.f32.mrf.mxu0
    %v247 = vadd.f32 %v206, %v246
    %248 = vdwg.mxu0
    %v249 = vld [vmem:[#allocation2 + $0x10] sm:$0xff]
    %v250 = vld [vmem:[#allocation2 + $0x30] sm:$0xff]
    %v251 = vld [vmem:[#allocation2 + $0x50] sm:$0xff]
    %v252 = vld [vmem:[#allocation2 + $0x70] sm:$0xff]
    %v253 = vld [vmem:[%s2 + $0x2] sm:$0x1]
    %v255 = vperm.slane %v253, 0
    %v258 = vsel %vm94, %v238, 0
    %v261 = vsel %vm94, %v241, 0
    %v264 = vsel %vm94, %v244, 0
    %v267 = vsel %vm94, %v247, 0
    %269 = vmatpush.msra.mxu0 0.0
    %270 = vmatpush.msra.mxu0 0.0
    %271 = vmatpush.msra.mxu0 0.0
    %272 = vmatpush.msra.mxu0 0.0
    %273 = vmatpush.msra.mxu0 0.0
    %274 = vmatpush.msra.mxu0 0.0
    %275 = vmatpush.msra.mxu0 0.0
    %276 = vmatpush.msra.mxu0 0.0
    %277 = vmatpush.msra.mxu0 0.0
    %278 = vmatpush.msra.mxu0 0.0
    %279 = vmatpush.msra.mxu0 0.0
    %280 = vmatpush.msra.mxu0 0.0
    %281 = vmatpush.msra.mxu0 %v252
    %282 = vmatpush.msra.mxu0 %v251
    %283 = vmatpush.msra.mxu0 %v250
    %284 = vmatpush.msra.mxu0 %v249
    %285 = vmatmul.f32.gmra.mxu0 %v258
    %v286 = vpop.f32.mrf.mxu0
    %v287 = vadd.f32 %v255, %v286
    %288 = vmatmul.f32.gmra.mxu0 %v261
    %v289 = vpop.f32.mrf.mxu0
    %v290 = vadd.f32 %v255, %v289
    %291 = vmatmul.f32.gmra.mxu0 %v264
    %v292 = vpop.f32.mrf.mxu0
    %v293 = vadd.f32 %v255, %v292
    %294 = vmatmul.f32.gmra.mxu0 %v267
    %v295 = vpop.f32.mrf.mxu0
    %v296 = vadd.f32 %v255, %v295
    %297 = vdwg.mxu0
    %302 = vrot.lane.b32.xlu0 %v287, 96
    %v303 = vpop.permute.xlu0 %302
    %304 = vrot.lane.b32.xlu0 %v290, 96
    %v305 = vpop.permute.xlu0 %304
    %306 = vrot.lane.b32.xlu0 %v293, 96
    %v307 = vpop.permute.xlu0 %306
    %308 = vrot.lane.b32.xlu0 %v296, 96
    %v309 = vpop.permute.xlu0 %308
    %v310 = vsel %vm94, %v287, 0
    %v312 = vsel %vm94, %v290, 0
    %v314 = vsel %vm94, %v293, 0
    %v316 = vsel %vm94, %v296, 0
    %v318 = vsel %vm94, %v303, 0
    %v320 = vsel %vm94, %v305, 0
    %v322 = vsel %vm94, %v307, 0
    %v324 = vsel %vm94, %v309, 0
    %326 = vmatpush.xpose.msra.mxu0 0.0
    %327 = vmatpush.xpose.msra.mxu0 0.0
    %328 = vmatpush.xpose.msra.mxu0 0.0
    %329 = vmatpush.xpose.msra.mxu0 0.0
    %330 = vmatpush.xpose.msra.mxu0 0.0
    %331 = vmatpush.xpose.msra.mxu0 0.0
    %332 = vmatpush.xpose.msra.mxu0 0.0
    %333 = vmatpush.xpose.msra.mxu0 0.0
    %334 = vmatpush.xpose.msra.mxu0 0.0
    %335 = vmatpush.xpose.msra.mxu0 0.0
    %336 = vmatpush.xpose.msra.mxu0 0.0
    %337 = vmatpush.xpose.msra.mxu0 0.0
    %338 = vmatpush.xpose.msra.mxu0 %v324
    %339 = vmatpush.xpose.msra.mxu0 %v322
    %340 = vmatpush.xpose.msra.mxu0 %v320
    %341 = vmatpush.xpose.msra.mxu0 %v318
    %342 = vmatmul.f32.gmra.mxu0 %v310
    %v343 = vpop.f32.mrf.mxu0
    %v344 = vadd.f32 0.0, %v343
    %345 = vmatmul.f32.gmra.mxu0 %v312
    %v346 = vpop.f32.mrf.mxu0
    %v347 = vadd.f32 0.0, %v346
    %348 = vmatmul.f32.gmra.mxu0 %v314
    %v349 = vpop.f32.mrf.mxu0
    %v350 = vadd.f32 0.0, %v349
    %351 = vmatmul.f32.gmra.mxu0 %v316
    %v352 = vpop.f32.mrf.mxu0
    %v353 = vadd.f32 0.0, %v352
    %354 = vdwg.mxu0
    %v355 = vsel %vm94, %v344, -inf
    %356 = vmax.xlane.f32.xlu0 %v355
    %v357 = vpop.xlane.xlu0 %356
    %v358 = vsel %vm94, %v347, -inf
    %359 = vmax.xlane.f32.xlu0 %v358
    %v360 = vpop.xlane.xlu0 %359
    %v361 = vsel %vm94, %v350, -inf
    %362 = vmax.xlane.f32.xlu0 %v361
    %v363 = vpop.xlane.xlu0 %362
    %v364 = vsel %vm94, %v353, -inf
    %365 = vmax.xlane.f32.xlu0 %v364
    %v366 = vpop.xlane.xlu0 %365
    %v367 = vsub.f32 %v344, %v357
    %v368 = vsub.f32 %v347, %v360
    %v369 = vsub.f32 %v350, %v363
    %v370 = vsub.f32 %v353, %v366
    %v371 = vmul.f32 %v367, 1.442695
    %v372 = vpow.pop %v371
    %v373 = vmul.f32 %v368, 1.442695
    %v374 = vpow.pop %v373
    %v375 = vmul.f32 %v369, 1.442695
    %v376 = vpow.pop %v375
    %v377 = vmul.f32 %v370, 1.442695
    %v378 = vpow.pop %v377
    %v379 = vsel %vm94, %v372, 0.0
    %380 = vadd.xlane.f32.xlu0 %v379
    %v381 = vpop.xlane.xlu0 %380
    %v382 = vsel %vm94, %v374, 0.0
    %383 = vadd.xlane.f32.xlu0 %v382
    %v384 = vpop.xlane.xlu0 %383
    %v385 = vsel %vm94, %v376, 0.0
    %386 = vadd.xlane.f32.xlu0 %v385
    %v387 = vpop.xlane.xlu0 %386
    %v388 = vsel %vm94, %v378, 0.0
    %389 = vadd.xlane.f32.xlu0 %v388
    %v390 = vpop.xlane.xlu0 %389
    %v391 = vrcp.pop %v381
    %v392 = vrcp.pop %v384
    %v393 = vrcp.pop %v387
    %v394 = vrcp.pop %v390
    %v395 = vmul.f32 %v372, %v391
    %v396 = vmul.f32 %v374, %v392
    %v397 = vmul.f32 %v376, %v393
    %v398 = vmul.f32 %v378, %v394
    %399 = vrot.lane.b32.xlu0 %v287, 64
    %v400 = vpop.permute.xlu0 %399
    %401 = vrot.lane.b32.xlu0 %v290, 64
    %v402 = vpop.permute.xlu0 %401
    %403 = vrot.lane.b32.xlu0 %v293, 64
    %v404 = vpop.permute.xlu0 %403
    %405 = vrot.lane.b32.xlu0 %v296, 64
    %v406 = vpop.permute.xlu0 %405
    %v411 = vmul.f32 %v395, %v400
    %v412 = vmul.f32 %v396, %v402
    %v413 = vmul.f32 %v397, %v404
    %v414 = vmul.f32 %v398, %v406
    %v415 = vld [vmem:[#allocation2 + $0x18] sm:$0xff]
    %v416 = vld [vmem:[#allocation2 + $0x38] sm:$0xff]
    %v417 = vld [vmem:[#allocation2 + $0x58] sm:$0xff]
    %v418 = vld [vmem:[#allocation2 + $0x78] sm:$0xff]
    %v419 = vld [vmem:[%s2 + $0x3] sm:$0x1]
    %v421 = vperm.slane %v419, 0
    %v424 = vsel %vm94, %v411, 0
    %v427 = vsel %vm94, %v412, 0
    %v430 = vsel %vm94, %v413, 0
    %v433 = vsel %vm94, %v414, 0
    %435 = vmatpush.msra.mxu0 0.0
    %436 = vmatpush.msra.mxu0 0.0
    %437 = vmatpush.msra.mxu0 0.0
    %438 = vmatpush.msra.mxu0 0.0
    %439 = vmatpush.msra.mxu0 0.0
    %440 = vmatpush.msra.mxu0 0.0
    %441 = vmatpush.msra.mxu0 0.0
    %442 = vmatpush.msra.mxu0 0.0
    %443 = vmatpush.msra.mxu0 0.0
    %444 = vmatpush.msra.mxu0 0.0
    %445 = vmatpush.msra.mxu0 0.0
    %446 = vmatpush.msra.mxu0 0.0
    %447 = vmatpush.msra.mxu0 %v418
    %448 = vmatpush.msra.mxu0 %v417
    %449 = vmatpush.msra.mxu0 %v416
    %450 = vmatpush.msra.mxu0 %v415
    %451 = vmatmul.f32.gmra.mxu0 %v424
    %v452 = vpop.f32.mrf.mxu0
    %v453 = vadd.f32 %v421, %v452
    %454 = vmatmul.f32.gmra.mxu0 %v427
    %v455 = vpop.f32.mrf.mxu0
    %v456 = vadd.f32 %v421, %v455
    %457 = vmatmul.f32.gmra.mxu0 %v430
    %v458 = vpop.f32.mrf.mxu0
    %v459 = vadd.f32 %v421, %v458
    %460 = vmatmul.f32.gmra.mxu0 %v433
    %v461 = vpop.f32.mrf.mxu0
    %v462 = vadd.f32 %v421, %v461
    %463 = vdwg.mxu0
    %464 = vst [vmem:[%s3] sm:$0xff] %v453
    %465 = vst [vmem:[%s3 + $0x8] sm:$0xff] %v456
    %466 = vst [vmem:[%s3 + $0x10] sm:$0xff] %v459
    %467 = vst [vmem:[%s3 + $0x18] sm:$0xff] %v462
    // Predicated region
    $region18: #{transformer_forward.1} parent=1 // pred_check
      _
    $region19: #{transformer_forward.1} parent=1 // pred_check_branch
      %469 = sbr.rel (0) target = $region21
    $region20: #{transformer_forward.1} parent=1 // pred_region
      _
    $region21: #{transformer_forward.1} parent=1 // pred_fallthru
      _
    // Predicated region
    $region22: #{transformer_forward.1} parent=1 // pred_check
      _
    $region23: #{transformer_forward.1} parent=1 // pred_check_branch
      %471 = sbr.rel (0) target = $region25
    $region24: #{transformer_forward.1} parent=1 // pred_region
      _
    $region25: #{transformer_forward.1} parent=1 // pred_fallthru
      _
    %472 = vsyncpa [#allocation3], 1

</llo_original>
